<compile_context>
chip_gen: v5e
topology: v5e:2x2
jax: 0.10.0
libtpu: 0.0.40
codegen_flags: <defaults>
</compile_context>

<pallas_src>
import math
from functools import partial

import numpy as np
import jax
import jax.numpy as jnp
from jax.experimental import pallas as pl
from jax.experimental.pallas import tpu as pltpu


def _round_up(x, m):
    return (x + m - 1) // m * m


def _pick_tile(dim, cap, align):
    """Largest tile <= cap (multiple of `align`) minimising padding waste."""
    d = _round_up(dim, align)
    if d <= cap:
        return d
    best, best_key = align, None
    for c in range(cap, align - 1, -align):
        key = ((-d) % c, -c)            # (padding waste, prefer larger tile)
        if best_key is None or key < best_key:
            best, best_key = c, key
    return best


def _pad2(x, rows, cols):
    r, c = x.shape
    if r == rows and c == cols:
        return x
    return jnp.pad(x, ((0, rows - r), (0, cols - c)))


# ---------------------------------------------------------------------------
# Pallas kernels
# ---------------------------------------------------------------------------
def _mm_kernel(a_ref, b_ref, o_ref, acc_ref):
    @pl.when(pl.program_id(2) == 0)
    def _():
        acc_ref[...] = jnp.zeros_like(acc_ref)

    acc_ref[...] += jnp.dot(a_ref[...], b_ref[...],
                            preferred_element_type=jnp.float32)

    @pl.when(pl.program_id(2) == pl.num_programs(2) - 1)
    def _():
        o_ref[...] = acc_ref[...].astype(o_ref.dtype)


def _mm_affine_kernel(a_ref, b_ref, s_ref, t_ref, o_ref, acc_ref, *, relu):
    """matmul + per-output-column affine (BN / bias) [+ ReLU] epilogue."""
    @pl.when(pl.program_id(2) == 0)
    def _():
        acc_ref[...] = jnp.zeros_like(acc_ref)

    acc_ref[...] += jnp.dot(a_ref[...], b_ref[...],
                            preferred_element_type=jnp.float32)

    @pl.when(pl.program_id(2) == pl.num_programs(2) - 1)
    def _():
        y = acc_ref[...] * s_ref[...] + t_ref[...]
        if relu:
            y = jnp.maximum(y, 0.0)
        o_ref[...] = y.astype(o_ref.dtype)


def _mm_affine_res_kernel(a_ref, b_ref, s_ref, t_ref, r_ref, o_ref, acc_ref, *, relu):
    """matmul + affine + residual add [+ ReLU] epilogue (bottleneck conv3)."""
    @pl.when(pl.program_id(2) == 0)
    def _():
        acc_ref[...] = jnp.zeros_like(acc_ref)

    acc_ref[...] += jnp.dot(a_ref[...], b_ref[...],
                            preferred_element_type=jnp.float32)

    @pl.when(pl.program_id(2) == pl.num_programs(2) - 1)
    def _():
        y = acc_ref[...] * s_ref[...] + t_ref[...] + r_ref[...].astype(jnp.float32)
        if relu:
            y = jnp.maximum(y, 0.0)
        o_ref[...] = y.astype(o_ref.dtype)


def _tap_max_kernel(p_ref, o_ref, *, taps):
    r = p_ref[0]
    for t in range(1, taps):            # running max over taps: pure VPU
        r = jnp.maximum(r, p_ref[t])
    o_ref[...] = r


def _gap_kernel(x_ref, o_ref, *, inv_hw):
    s = jnp.sum(x_ref[...].astype(jnp.float32), axis=1) * inv_hw
    o_ref[...] = s.astype(o_ref.dtype)


# ---------------------------------------------------------------------------
# Pallas wrappers
# ---------------------------------------------------------------------------
def _matmul_call(kernel, a_p, b_p, extra, tm, tn, tk, out_dtype, extra_specs):
    Mp, _ = a_p.shape
    _, Np = b_p.shape
    Kp = a_p.shape[1]
    grid = (Mp // tm, Np // tn, Kp // tk)
    in_specs = [pl.BlockSpec((tm, tk), lambda i, j, k: (i, k)),
                pl.BlockSpec((tk, tn), lambda i, j, k: (k, j))] + list(extra_specs)
    return pl.pallas_call(
        kernel,
        out_shape=jax.ShapeDtypeStruct((Mp, Np), out_dtype),
        grid_spec=pltpu.PrefetchScalarGridSpec(
            num_scalar_prefetch=0,
            grid=grid,
            in_specs=in_specs,
            out_specs=pl.BlockSpec((tm, tn), lambda i, j, k: (i, j)),
            scratch_shapes=[pltpu.VMEM((tm, tn), jnp.float32)]),
        compiler_params=pltpu.CompilerParams(
            dimension_semantics=("parallel", "parallel", "arbitrary")),
    )(a_p, b_p, *extra)


@partial(jax.jit, static_argnames=("relu", "out_dtype"))
def pallas_matmul_fused(a, b, scale, shift, residual=None, *, relu=False,
                        out_dtype=jnp.bfloat16):
    """(M,K)@(K,N): bf16 operands on the MXU, f32 VMEM accumulation, fused
    per-column affine (BatchNorm/bias) + optional residual-add + ReLU epilogue."""
    M, K = a.shape
    K2, N = b.shape
    assert K == K2
    tm = _pick_tile(M, 256, 16)
    tn = _pick_tile(N, 256, 128)
    tk = _pick_tile(K, 512, 128)
    Mp, Kp, Np = _round_up(M, tm), _round_up(K, tk), _round_up(N, tn)
    a_p = _pad2(a.astype(jnp.bfloat16), Mp, Kp)
    b_p = _pad2(b.astype(jnp.bfloat16), Kp, Np)
    s_p = _pad2(scale.astype(jnp.float32).reshape(1, N), 1, Np)
    t_p = _pad2(shift.astype(jnp.float32).reshape(1, N), 1, Np)
    vec_spec = pl.BlockSpec((1, tn), lambda i, j, k: (0, j))
    if residual is None:
        out = _matmul_call(partial(_mm_affine_kernel, relu=relu), a_p, b_p,
                           (s_p, t_p), tm, tn, tk, out_dtype,
                           (vec_spec, vec_spec))
    else:
        r_p = _pad2(residual.astype(jnp.bfloat16), Mp, Np)
        out = _matmul_call(partial(_mm_affine_res_kernel, relu=relu), a_p, b_p,
                           (s_p, t_p, r_p), tm, tn, tk, out_dtype,
                           (vec_spec, vec_spec,
                            pl.BlockSpec((tm, tn), lambda i, j, k: (i, j))))
    return out[:M, :N]


@partial(jax.jit, static_argnames=("out_dtype",))
def pallas_matmul(a, b, *, out_dtype=jnp.float32):
    """Plain bf16-operand matmul with f32 accumulation (used for bilinear resize)."""
    M, K = a.shape
    K2, N = b.shape
    assert K == K2
    tm = _pick_tile(M, 256, 16)
    tn = _pick_tile(N, 256, 128)
    tk = _pick_tile(K, 512, 128)
    Mp, Kp, Np = _round_up(M, tm), _round_up(K, tk), _round_up(N, tn)
    a_p = _pad2(a.astype(jnp.bfloat16), Mp, Kp)
    b_p = _pad2(b.astype(jnp.bfloat16), Kp, Np)
    out = _matmul_call(_mm_kernel, a_p, b_p, (), tm, tn, tk, out_dtype, ())
    return out[:M, :N]


@jax.jit
def pallas_tap_max(p):
    """p: (T, M, C) -> elementwise max over leading tap axis -> (M, C), tiled over M."""
    T, M, C = p.shape
    Cp = _round_up(C, 128)
    bm = min(512, _round_up(M, 16))
    Mp = _round_up(M, bm)
    if (Mp, Cp) != (M, C):
        neg = float(jnp.finfo(p.dtype).min)
        p = jnp.pad(p, ((0, 0), (0, Mp - M), (0, Cp - C)), constant_values=neg)
    out = pl.pallas_call(
        partial(_tap_max_kernel, taps=T),
        out_shape=jax.ShapeDtypeStruct((Mp, Cp), p.dtype),
        grid=(Mp // bm,),
        in_specs=[pl.BlockSpec((T, bm, Cp), lambda i: (0, i, 0))],
        out_specs=pl.BlockSpec((bm, Cp), lambda i: (i, 0)),
        compiler_params=pltpu.CompilerParams(dimension_semantics=("parallel",)),
    )(p)
    return out[:M, :C]


@jax.jit
def pallas_global_avg_pool(x):
    """AdaptiveAvgPool2d(1): (N,H,W,C) -> (N,1,1,C), channel-blocked reduction kernel."""
    N, H, W, C = x.shape
    HW = H * W
    Cp = _round_up(C, 128)
    tc = 512 if Cp % 512 == 0 else (256 if Cp % 256 == 0 else 128)
    xr = x.reshape(N, HW, C)
    if Cp != C:
        xr = jnp.pad(xr, ((0, 0), (0, 0), (0, Cp - C)))
    out = pl.pallas_call(
        partial(_gap_kernel, inv_hw=1.0 / HW),
        out_shape=jax.ShapeDtypeStruct((N, Cp), x.dtype),
        grid=(Cp // tc,),
        in_specs=[pl.BlockSpec((N, HW, tc), lambda c: (0, 0, c))],
        out_specs=pl.BlockSpec((N, tc), lambda c: (0, c)),
        compiler_params=pltpu.CompilerParams(dimension_semantics=("parallel",)),
    )(xr)
    return out[:, :C].reshape(N, 1, 1, C)


# ---------------------------------------------------------------------------
# Neural-net building blocks (glue in plain JAX, compute in Pallas)
# ---------------------------------------------------------------------------
def conv_bn(x, w, bn, *, stride=1, padding=0, dilation=1, relu=True,
            residual=None, out_dtype=jnp.bfloat16):
    """x: (N,H,W,Cin) bf16 NHWC;  w: (O,I,KH,KW) torch OIHW.
    conv -> per-channel affine (BN / bias) [-> + residual] [-> ReLU], fused in one kernel."""
    N, H, W, C = x.shape
    O, I, KH, KW = w.shape
    assert I == C
    s, p, d = stride, padding, dilation
    Ho = (H + 2 * p - d * (KH - 1) - 1) // s + 1
    Wo = (W + 2 * p - d * (KW - 1) - 1) // s + 1
    if KH == 1 and KW == 1 and p == 0:
        xs = x if s == 1 else x[:, ::s, ::s, :]
        a = xs.reshape(N * Ho * Wo, C)
    else:
        # TODO(synk): replace im2col with an in-kernel tap reduction reading shifted
        # windows of the padded activation directly (needs element-offset BlockSpec
        # indexing); patches are built in bf16 to halve the materialization traffic.
        xp = jnp.pad(x, ((0, 0), (p, p), (p, p), (0, 0))) if p else x
        cols = []
        for fh in range(KH):
            for fw in range(KW):
                hs, ws = fh * d, fw * d
                sl = xp[:, hs:hs + s * (Ho - 1) + 1:s, ws:ws + s * (Wo - 1) + 1:s, :]
                cols.append(sl)
        a = jnp.concatenate(cols, axis=-1).reshape(N * Ho * Wo, KH * KW * C)
    wm = jnp.transpose(w, (2, 3, 1, 0)).reshape(KH * KW * I, O)
    r = None if residual is None else residual.reshape(N * Ho * Wo, O)
    out = pallas_matmul_fused(a, wm, bn["scale"], bn["shift"], r,
                              relu=relu, out_dtype=out_dtype)
    return out.reshape(N, Ho, Wo, O)


def maxpool2d(x, ksize=3, stride=2, padding=1):
    N, H, W, C = x.shape
    Ho = (H + 2 * padding - ksize) // stride + 1
    Wo = (W + 2 * padding - ksize) // stride + 1
    neg = float(jnp.finfo(x.dtype).min)
    xp = jnp.pad(x, ((0, 0), (padding, padding), (padding, padding), (0, 0)),
                 constant_values=neg)
    taps = []
    for fh in range(ksize):
        for fw in range(ksize):
            sl = xp[:, fh:fh + stride * (Ho - 1) + 1:stride,
                    fw:fw + stride * (Wo - 1) + 1:stride, :]
            taps.append(sl.reshape(1, N * Ho * Wo, C))
    stacked = jnp.concatenate(taps, axis=0)            # (taps, M, C)
    return pallas_tap_max(stacked).reshape(N, Ho, Wo, C)


def _bilinear_matrix(out_size, in_size):
    """PyTorch F.interpolate(bilinear, align_corners=False) as a linear map."""
    if in_size == 1:
        return jnp.ones((out_size, 1), jnp.float32)
    scale = in_size / out_size
    i = np.arange(out_size)
    src = np.maximum((i + 0.5) * scale - 0.5, 0.0)
    x0 = np.minimum(np.floor(src).astype(np.int64), in_size - 1)
    x1 = np.minimum(x0 + 1, in_size - 1)
    w1 = src - x0
    w0 = 1.0 - w1
    m = np.zeros((out_size, in_size), np.float32)
    np.add.at(m, (i, x0), w0)
    np.add.at(m, (i, x1), w1)
    return jnp.asarray(m)


def bilinear_upsample(x, Ho, Wo):
    N, H, W, C = x.shape
    if (H, W) == (Ho, Wo):
        return x
    Mh = _bilinear_matrix(Ho, H)
    Mw = _bilinear_matrix(Wo, W)
    xt = jnp.transpose(x, (1, 0, 2, 3)).reshape(H, N * W * C)
    yh = pallas_matmul(Mh, xt, out_dtype=jnp.float32).reshape(Ho, N, W, C)
    yh = jnp.transpose(yh, (2, 1, 0, 3)).reshape(W, N * Ho * C)   # (W, N*Ho*C)
    yw = pallas_matmul(Mw, yh, out_dtype=jnp.float32).reshape(Wo, N, Ho, C)
    return jnp.transpose(yw, (1, 2, 0, 3))                        # (N, Ho, Wo, C)


# ---------------------------------------------------------------------------
# Deterministic parameter construction (synthetic; mirrors module __init__ shapes)
# ---------------------------------------------------------------------------
class ParamGen:
    def __init__(self, seed):
        self._key = jax.random.PRNGKey(seed)
        self._n = 0

    def next_key(self):
        self._n += 1
        return jax.random.fold_in(self._key, self._n)


def xavier_conv(pg, o, i, kh, kw):
    fan_in, fan_out = i * kh * kw, o * kh * kw
    std = math.sqrt(2.0 / (fan_in + fan_out))
    return std * jax.random.normal(pg.next_key(), (o, i, kh, kw), jnp.float32)


def bn_params(c, eps=1e-5):
    gamma = jnp.ones((c,), jnp.float32)
    beta = jnp.zeros((c,), jnp.float32)
    mean = jnp.zeros((c,), jnp.float32)
    var = jnp.ones((c,), jnp.float32)
    scale = gamma / jnp.sqrt(var + eps)
    return {"scale": scale, "shift": beta - mean * scale}


def make_bottleneck(pg, inplanes, planes, stride, dilation, downsample):
    p = {
        "conv1": xavier_conv(pg, planes, inplanes, 1, 1), "bn1": bn_params(planes),
        "conv2": xavier_conv(pg, planes, planes, 3, 3), "bn2": bn_params(planes),
        "conv3": xavier_conv(pg, planes * 4, planes, 1, 1), "bn3": bn_params(planes * 4),
        "stride": stride, "dilation": dilation,
    }
    if downsample:
        p["ds_conv"] = xavier_conv(pg, planes * 4, inplanes, 1, 1)
        p["ds_bn"] = bn_params(planes * 4)
    return p


def build_backbone(pg, in_channels):
    params = {"conv1": xavier_conv(pg, 64, in_channels, 7, 7), "bn1": bn_params(64)}
    cfg = [(64, 3, 1, False), (128, 4, 2, False), (256, 23, 2, True), (512, 3, 2, True)]
    inplanes, dilation, layers = 64, 1, []
    for planes, blocks, stride, dilate in cfg:
        prev_dilation = dilation
        if dilate:
            dilation *= stride
            stride = 1
        downsample = (stride != 1) or (inplanes != planes * 4)
        blk = [make_bottleneck(pg, inplanes, planes, stride, prev_dilation, downsample)]
        inplanes = planes * 4
        for _ in range(1, blocks):
            blk.append(make_bottleneck(pg, inplanes, planes, 1, dilation, False))
        layers.append(blk)
    params["layers"] = layers
    return params


def build_head(pg, n_classes):
    p = {"aspp0_w": xavier_conv(pg, 256, 2048, 1, 1), "aspp0_bn": bn_params(256)}
    for i, _r in enumerate((12, 24, 36), start=1):
        p[f"aspp{i}_w"] = xavier_conv(pg, 256, 2048, 3, 3)
        p[f"aspp{i}_bn"] = bn_params(256)
    p["aspp_pool_w"] = xavier_conv(pg, 256, 2048, 1, 1)
    p["aspp_pool_bn"] = bn_params(256)
    p["aspp_proj_w"] = xavier_conv(pg, 256, 5 * 256, 1, 1)
    p["aspp_proj_bn"] = bn_params(256)
    p["head_conv_w"] = xavier_conv(pg, 256, 256, 3, 3)
    p["head_bn"] = bn_params(256)
    p["cls_w"] = xavier_conv(pg, n_classes, 256, 1, 1)
    p["cls_b"] = jnp.zeros((n_classes,), jnp.float32)
    return p


def build_params(in_channels, n_classes, seed=42):
    pg = ParamGen(seed)
    return {"backbone": build_backbone(pg, in_channels), "head": build_head(pg, n_classes)}


# ---------------------------------------------------------------------------
# Forward pass
# ---------------------------------------------------------------------------
def bottleneck_fwd(x, p):
    out = conv_bn(x, p["conv1"], p["bn1"], relu=True)
    out = conv_bn(out, p["conv2"], p["bn2"], relu=True,
                  stride=p["stride"], padding=p["dilation"], dilation=p["dilation"])
    if "ds_conv" in p:
        identity = conv_bn(x, p["ds_conv"], p["ds_bn"], relu=False, stride=p["stride"])
    else:
        identity = x
    # conv3 + BN3 + residual add + ReLU all fused into one matmul epilogue.
    return conv_bn(out, p["conv3"], p["bn3"], relu=True, residual=identity)


def deeplab_head_fwd(x, p):
    N, H, W, _ = x.shape
    branches = [conv_bn(x, p["aspp0_w"], p["aspp0_bn"], relu=True)]
    for i, r in enumerate((12, 24, 36), start=1):
        branches.append(conv_bn(x, p[f"aspp{i}_w"], p[f"aspp{i}_bn"], relu=True,
                                padding=r, dilation=r))
    pooled = pallas_global_avg_pool(x)
    pb = conv_bn(pooled, p["aspp_pool_w"], p["aspp_pool_bn"], relu=True)
    # bilinear upsample from a 1x1 source == broadcast (exact)
    branches.append(jnp.broadcast_to(pb, (N, H, W, pb.shape[-1])))
    cat = jnp.concatenate(branches, axis=-1)
    proj = conv_bn(cat, p["aspp_proj_w"], p["aspp_proj_bn"], relu=True)
    # Dropout(0.5): identity in eval mode.
    h = conv_bn(proj, p["head_conv_w"], p["head_bn"], relu=True, padding=1)
    nc = p["cls_w"].shape[0]
    cls_affine = {"scale": jnp.ones((nc,), jnp.float32), "shift": p["cls_b"]}
    # classifier conv + bias fused; logits kept in f32 for the resize tail
    return conv_bn(h, p["cls_w"], cls_affine, relu=False, out_dtype=jnp.float32)


def ilf_deeplabv3_forward(params, x, y):
    """x, y: NCHW float32.  Returns NCHW (N, n_classes, H, W) == base_model(cat)['out']."""
    inp = jnp.concatenate([x, y], axis=1)
    N, C, H, W = inp.shape
    feat = jnp.transpose(inp, (0, 2, 3, 1)).astype(jnp.bfloat16)   # NHWC, bf16 activations
    bb = params["backbone"]
    feat = conv_bn(feat, bb["conv1"], bb["bn1"], relu=True, stride=2, padding=3)
    feat = maxpool2d(feat, ksize=3, stride=2, padding=1)
    for layer in bb["layers"]:
        for blk in layer:
            feat = bottleneck_fwd(feat, blk)
    logits = deeplab_head_fwd(feat, params["head"])
    out = bilinear_upsample(logits, H, W)
    return jnp.transpose(out, (0, 3, 1, 2))


# ---------------------------------------------------------------------------
if __name__ == "__main__":
    key = jax.random.PRNGKey(0)
    kx, ky = jax.random.split(key)
    x = jax.random.normal(kx, (2, 4, 16, 16), jnp.float32)   # RGB-like branch
    y = jax.random.normal(ky, (2, 4, 16, 16), jnp.float32)   # second modality
    n_classes = 3
    params = build_params(in_channels=x.shape[1] + y.shape[1], n_classes=n_classes, seed=0)

    out = ilf_deeplabv3_forward(params, x, y)
    out = jax.block_until_ready(out)

    assert out.shape == (2, n_classes, 16, 16), out.shape
    assert bool(jnp.all(jnp.isfinite(out)))
    print("KERNEL_OK")
</pallas_src>

<mosaic_0001>
module attributes {stable_mosaic.version = 11 : i64} {
  func.func @_mm_affine_kernel(%arg0: i32, %arg1: i32, %arg2: i32, %arg3: memref<128x512xbf16, #tpu.memory_space<vmem>>, %arg4: memref<512x128xbf16, #tpu.memory_space<vmem>>, %arg5: memref<1x128xf32, #tpu.memory_space<vmem>>, %arg6: memref<1x128xf32, #tpu.memory_space<vmem>>, %arg7: memref<128x128xbf16, #tpu.memory_space<vmem>>, %arg8: memref<128x128xf32, #tpu.memory_space<vmem>>) attributes {dimension_semantics = [#tpu.dimension_semantics<parallel>, #tpu.dimension_semantics<parallel>, #tpu.dimension_semantics<arbitrary>], iteration_bounds = array<i64: 1, 1, 1>, scalar_prefetch = 0 : i64, scratch_operands = 1 : i64, tpu.core_type = #tpu.core_type<tc>, window_params = [{transform_indices = @transform_0, window_bounds = array<i64: 128, 512>}, {transform_indices = @transform_1, window_bounds = array<i64: 512, 128>}, {transform_indices = @transform_2, window_bounds = array<i64: 1, 128>}, {transform_indices = @transform_3, window_bounds = array<i64: 1, 128>}, {transform_indices = @transform_4, window_bounds = array<i64: 128, 128>}]} {
    %c0_i32 = arith.constant 0 : i32
    %0 = arith.cmpi eq, %arg2, %c0_i32 : i32
    %1 = arith.extui %0 : i1 to i32
    %c0_i32_0 = arith.constant 0 : i32
    %2 = arith.cmpi ne, %1, %c0_i32_0 : i32
    scf.if %2 {
      %cst_10 = arith.constant 0.000000e+00 : f32
      %12 = vector.broadcast %cst_10 : f32 to vector<128x128xf32>
      %c0_11 = arith.constant 0 : index
      %c0_12 = arith.constant 0 : index
      %13 = vector.load %arg8[%c0_11, %c0_12] : memref<128x128xf32, #tpu.memory_space<vmem>>, vector<128x128xf32>
      tpu.vector_store %arg8[%c0_11, %c0_12], %12 {strides = array<i32>} : memref<128x128xf32, #tpu.memory_space<vmem>>, vector<128x128xf32>,
    } else {
    }
    %c0 = arith.constant 0 : index
    %c0_1 = arith.constant 0 : index
    %3 = vector.load %arg8[%c0, %c0_1] : memref<128x128xf32, #tpu.memory_space<vmem>>, vector<128x128xf32>
    %c0_2 = arith.constant 0 : index
    %c0_3 = arith.constant 0 : index
    %4 = vector.load %arg3[%c0_2, %c0_3] : memref<128x512xbf16, #tpu.memory_space<vmem>>, vector<128x512xbf16>
    %c0_4 = arith.constant 0 : index
    %c0_5 = arith.constant 0 : index
    %5 = vector.load %arg4[%c0_4, %c0_5] : memref<512x128xbf16, #tpu.memory_space<vmem>>, vector<512x128xbf16>
    %cst = arith.constant dense<0.000000e+00> : vector<128x128xf32>
    %6 = tpu.matmul %4, %5, %cst {dimension_numbers = #tpu.dot_dimension_numbers<[1], [0], [0], [1], [0, 0, 1, 1], [], []>} : vector<128x512xbf16>, vector<512x128xbf16>, vector<128x128xf32> -> vector<128x128xf32>
    %7 = arith.addf %3, %6 : vector<128x128xf32>
    %c0_6 = arith.constant 0 : index
    %c0_7 = arith.constant 0 : index
    %8 = vector.load %arg8[%c0_6, %c0_7] : memref<128x128xf32, #tpu.memory_space<vmem>>, vector<128x128xf32>
    tpu.vector_store %arg8[%c0_6, %c0_7], %7 {strides = array<i32>} : memref<128x128xf32, #tpu.memory_space<vmem>>, vector<128x128xf32>,
    %c0_i32_8 = arith.constant 0 : i32
    %9 = arith.cmpi eq, %arg2, %c0_i32_8 : i32
    %10 = arith.extui %9 : i1 to i32
    %c0_i32_9 = arith.constant 0 : i32
    %11 = arith.cmpi ne, %10, %c0_i32_9 : i32
    scf.if %11 {
      %c0_10 = arith.constant 0 : index
      %c0_11 = arith.constant 0 : index
      %12 = vector.load %arg8[%c0_10, %c0_11] : memref<128x128xf32, #tpu.memory_space<vmem>>, vector<128x128xf32>
      %c0_12 = arith.constant 0 : index
      %c0_13 = arith.constant 0 : index
      %13 = vector.load %arg5[%c0_12, %c0_13] : memref<1x128xf32, #tpu.memory_space<vmem>>, vector<1x128xf32>
      %14 = vector.broadcast %13 : vector<1x128xf32> to vector<128x128xf32>
      %15 = arith.mulf %12, %14 : vector<128x128xf32>
      %c0_14 = arith.constant 0 : index
      %c0_15 = arith.constant 0 : index
      %16 = vector.load %arg6[%c0_14, %c0_15] : memref<1x128xf32, #tpu.memory_space<vmem>>, vector<1x128xf32>
      %17 = vector.broadcast %16 : vector<1x128xf32> to vector<128x128xf32>
      %18 = arith.addf %15, %17 : vector<128x128xf32>
      %cst_16 = arith.constant 0.000000e+00 : f32
      %19 = vector.broadcast %cst_16 : f32 to vector<128x128xf32>
      %20 = arith.maximumf %18, %19 : vector<128x128xf32>
      %21 = arith.truncf %20 : vector<128x128xf32> to vector<128x128xbf16>
      %c0_17 = arith.constant 0 : index
      %c0_18 = arith.constant 0 : index
      %22 = vector.load %arg7[%c0_17, %c0_18] : memref<128x128xbf16, #tpu.memory_space<vmem>>, vector<128x128xbf16>
      tpu.vector_store %arg7[%c0_17, %c0_18], %21 {strides = array<i32>} : memref<128x128xbf16, #tpu.memory_space<vmem>>, vector<128x128xbf16>,
    } else {
    }
    return
  }
  func.func @transform_0(%arg0: i32, %arg1: i32, %arg2: i32) -> (i32, i32) {
    %c0_i32 = arith.constant 0 : i32
    return %arg0, %arg2 : i32, i32
  }
  func.func @transform_1(%arg0: i32, %arg1: i32, %arg2: i32) -> (i32, i32) {
    %c0_i32 = arith.constant 0 : i32
    return %arg2, %arg1 : i32, i32
  }
  func.func @transform_2(%arg0: i32, %arg1: i32, %arg2: i32) -> (i32, i32) {
    %c0_i32 = arith.constant 0 : i32
    %c0_i32_0 = arith.constant 0 : i32
    return %c0_i32, %arg1 : i32, i32
  }
  func.func @transform_3(%arg0: i32, %arg1: i32, %arg2: i32) -> (i32, i32) {
    %c0_i32 = arith.constant 0 : i32
    %c0_i32_0 = arith.constant 0 : i32
    return %c0_i32, %arg1 : i32, i32
  }
  func.func @transform_4(%arg0: i32, %arg1: i32, %arg2: i32) -> (i32, i32) {
    %c0_i32 = arith.constant 0 : i32
    return %arg0, %arg1 : i32, i32
  }
}

</mosaic_0001>

<llo_original>
// kernel: pallas_matmul_fused.1
$region0: #{pallas_matmul_fused.1}
  #allocation0 [shape = 'u32[]', space=smem, size = 0x4, offset = 0x4, fixed_abs, tag = 'smem constant byte address 0x4 - core index']
  #allocation1 [shape = 'u32[72,128]{1,0:T(1,128)}', space=vmem, size = 0x9000, scoped, tag = 'internal scratch']
  #allocation2 [shape = 'f32[128,128]{1,0:T(8,128)}', space=vmem, size = 0x10000, scoped, tag = 'scratch operand']
  %s0 = inlined_call_operand.vmem [shape: bf16[128,512], index: 0, kind: input, shape index: {}]
  %s1 = inlined_call_operand.vmem [shape: bf16[512,128], index: 1, kind: input, shape index: {}]
  %s2 = inlined_call_operand.vmem [shape: f32[1,128], index: 2, kind: input, shape index: {}]
  %s3 = inlined_call_operand.vmem [shape: f32[1,128], index: 3, kind: input, shape index: {}]
  %s4 = inlined_call_operand.vmem [shape: bf16[128,128], index: 4, kind: output, shape index: {}]
  %s5 = sld [smem:[#allocation0]]
  $region34: #{pallas_matmul_fused.1} parent=0
    _
  %s7 = ssub.s32 1, %s5
  %s8 = scalar_select 0, %s7, %s5
  // Predicated region
  $region2: #{pallas_matmul_fused.1} parent=0 // pred_check
    _
  $region3: #{pallas_matmul_fused.1} parent=0 // pred_check_branch
    %10 = sbr.rel (0) target = $region5
  $region4: #{pallas_matmul_fused.1} parent=0 // pred_region
    _
  $region5: #{pallas_matmul_fused.1} parent=0 // pred_fallthru
    _
  // Predicated region
  $region6: #{pallas_matmul_fused.1} parent=0 // pred_check
    _
  $region7: #{pallas_matmul_fused.1} parent=0 // pred_check_branch
    %12 = sbr.rel (0) target = $region9
  $region8: #{pallas_matmul_fused.1} parent=0 // pred_region
    _
  $region9: #{pallas_matmul_fused.1} parent=0 // pred_fallthru
    _
  // Predicated region
  $region10: #{pallas_matmul_fused.1} parent=0 // pred_check
    _
  $region11: #{pallas_matmul_fused.1} parent=0 // pred_check_branch
    %14 = sbr.rel (0) target = $region13
  $region12: #{pallas_matmul_fused.1} parent=0 // pred_region
    _
  $region13: #{pallas_matmul_fused.1} parent=0 // pred_fallthru
    _
  // Predicated region
  $region14: #{pallas_matmul_fused.1} parent=0 // pred_check
    _
  $region15: #{pallas_matmul_fused.1} parent=0 // pred_check_branch
    %16 = sbr.rel (0) target = $region17
  $region16: #{pallas_matmul_fused.1} parent=0 // pred_region
    _
  $region17: #{pallas_matmul_fused.1} parent=0 // pred_fallthru
    _
  %p17 = scmp.eq.s32.totalorder 0, 0
  // Predicated region
  $region18: #{pallas_matmul_fused.1} parent=0 // pred_check
    %p18 = pneg %p17
  $region19: #{pallas_matmul_fused.1} parent=0 // pred_check_branch
    %20 = sbr.rel (%p18) target = $region21
  $region20: #{pallas_matmul_fused.1} parent=0 // pred_region
    %21 = vst [vmem:[#allocation2] sm:$0xff] 0.0
    %22 = vst [vmem:[#allocation2 + $0x8] sm:$0xff] 0.0
    %23 = vst [vmem:[#allocation2 + $0x10] sm:$0xff] 0.0
    %24 = vst [vmem:[#allocation2 + $0x18] sm:$0xff] 0.0
    %25 = vst [vmem:[#allocation2 + $0x20] sm:$0xff] 0.0
    %26 = vst [vmem:[#allocation2 + $0x28] sm:$0xff] 0.0
    %27 = vst [vmem:[#allocation2 + $0x30] sm:$0xff] 0.0
    %28 = vst [vmem:[#allocation2 + $0x38] sm:$0xff] 0.0
    %29 = vst [vmem:[#allocation2 + $0x40] sm:$0xff] 0.0
    %30 = vst [vmem:[#allocation2 + $0x48] sm:$0xff] 0.0
    %31 = vst [vmem:[#allocation2 + $0x50] sm:$0xff] 0.0
    %32 = vst [vmem:[#allocation2 + $0x58] sm:$0xff] 0.0
    %33 = vst [vmem:[#allocation2 + $0x60] sm:$0xff] 0.0
    %34 = vst [vmem:[#allocation2 + $0x68] sm:$0xff] 0.0
    %35 = vst [vmem:[#allocation2 + $0x70] sm:$0xff] 0.0
    %36 = vst [vmem:[#allocation2 + $0x78] sm:$0xff] 0.0
  $region21: #{pallas_matmul_fused.1} parent=0 // pred_fallthru
    _
  %v37 = vld [vmem:[#allocation2] sm:$0xff]
  %v38 = vld [vmem:[#allocation2 + $0x8] sm:$0xff]
  %v39 = vld [vmem:[#allocation2 + $0x10] sm:$0xff]
  %v40 = vld [vmem:[#allocation2 + $0x18] sm:$0xff]
  %v41 = vld [vmem:[#allocation2 + $0x20] sm:$0xff]
  %v42 = vld [vmem:[#allocation2 + $0x28] sm:$0xff]
  %v43 = vld [vmem:[#allocation2 + $0x30] sm:$0xff]
  %v44 = vld [vmem:[#allocation2 + $0x38] sm:$0xff]
  %v45 = vld [vmem:[#allocation2 + $0x40] sm:$0xff]
  %v46 = vld [vmem:[#allocation2 + $0x48] sm:$0xff]
  %v47 = vld [vmem:[#allocation2 + $0x50] sm:$0xff]
  %v48 = vld [vmem:[#allocation2 + $0x58] sm:$0xff]
  %v49 = vld [vmem:[#allocation2 + $0x60] sm:$0xff]
  %v50 = vld [vmem:[#allocation2 + $0x68] sm:$0xff]
  %v51 = vld [vmem:[#allocation2 + $0x70] sm:$0xff]
  %v52 = vld [vmem:[#allocation2 + $0x78] sm:$0xff]
  %v53 = vld [vmem:[%s0] sm:$0xff]
  %v54 = vld [vmem:[%s0 + $0x8] sm:$0xff]
  %v55 = vld [vmem:[%s0 + $0x10] sm:$0xff]
  %v56 = vld [vmem:[%s0 + $0x18] sm:$0xff]
  %v57 = vld [vmem:[%s0 + $0x20] sm:$0xff]
  %v58 = vld [vmem:[%s0 + $0x28] sm:$0xff]
  %v59 = vld [vmem:[%s0 + $0x30] sm:$0xff]
  %v60 = vld [vmem:[%s0 + $0x38] sm:$0xff]
  %v61 = vld [vmem:[%s0 + $0x40] sm:$0xff]
  %v62 = vld [vmem:[%s0 + $0x48] sm:$0xff]
  %v63 = vld [vmem:[%s0 + $0x50] sm:$0xff]
  %v64 = vld [vmem:[%s0 + $0x58] sm:$0xff]
  %v65 = vld [vmem:[%s0 + $0x60] sm:$0xff]
  %v66 = vld [vmem:[%s0 + $0x68] sm:$0xff]
  %v67 = vld [vmem:[%s0 + $0x70] sm:$0xff]
  %v68 = vld [vmem:[%s0 + $0x78] sm:$0xff]
  %v69 = vld [vmem:[%s0 + $0x80] sm:$0xff]
  %v70 = vld [vmem:[%s0 + $0x88] sm:$0xff]
  %v71 = vld [vmem:[%s0 + $0x90] sm:$0xff]
  %v72 = vld [vmem:[%s0 + $0x98] sm:$0xff]
  %v73 = vld [vmem:[%s0 + $0xa0] sm:$0xff]
  %v74 = vld [vmem:[%s0 + $0xa8] sm:$0xff]
  %v75 = vld [vmem:[%s0 + $0xb0] sm:$0xff]
  %v76 = vld [vmem:[%s0 + $0xb8] sm:$0xff]
  %v77 = vld [vmem:[%s0 + $0xc0] sm:$0xff]
  %v78 = vld [vmem:[%s0 + $0xc8] sm:$0xff]
  %v79 = vld [vmem:[%s0 + $0xd0] sm:$0xff]
  %v80 = vld [vmem:[%s0 + $0xd8] sm:$0xff]
  %v81 = vld [vmem:[%s0 + $0xe0] sm:$0xff]
  %v82 = vld [vmem:[%s0 + $0xe8] sm:$0xff]
  %v83 = vld [vmem:[%s0 + $0xf0] sm:$0xff]
  %v84 = vld [vmem:[%s0 + $0xf8] sm:$0xff]
  %v85 = vld [vmem:[%s1] sm:$0xf]
  %v86 = vld [vmem:[%s1 + $0x4] sm:$0xf]
  %v87 = vld [vmem:[%s1 + $0x8] sm:$0xf]
  %v88 = vld [vmem:[%s1 + $0xc] sm:$0xf]
  %v89 = vld [vmem:[%s1 + $0x10] sm:$0xf]
  %v90 = vld [vmem:[%s1 + $0x14] sm:$0xf]
  %v91 = vld [vmem:[%s1 + $0x18] sm:$0xf]
  %v92 = vld [vmem:[%s1 + $0x1c] sm:$0xf]
  %v93 = vld [vmem:[%s1 + $0x20] sm:$0xf]
  %v94 = vld [vmem:[%s1 + $0x24] sm:$0xf]
  %v95 = vld [vmem:[%s1 + $0x28] sm:$0xf]
  %v96 = vld [vmem:[%s1 + $0x2c] sm:$0xf]
  %v97 = vld [vmem:[%s1 + $0x30] sm:$0xf]
  %v98 = vld [vmem:[%s1 + $0x34] sm:$0xf]
  %v99 = vld [vmem:[%s1 + $0x38] sm:$0xf]
  %v100 = vld [vmem:[%s1 + $0x3c] sm:$0xf]
  %v101 = vld [vmem:[%s1 + $0x40] sm:$0xf]
  %v102 = vld [vmem:[%s1 + $0x44] sm:$0xf]
  %v103 = vld [vmem:[%s1 + $0x48] sm:$0xf]
  %v104 = vld [vmem:[%s1 + $0x4c] sm:$0xf]
  %v105 = vld [vmem:[%s1 + $0x50] sm:$0xf]
  %v106 = vld [vmem:[%s1 + $0x54] sm:$0xf]
  %v107 = vld [vmem:[%s1 + $0x58] sm:$0xf]
  %v108 = vld [vmem:[%s1 + $0x5c] sm:$0xf]
  %v109 = vld [vmem:[%s1 + $0x60] sm:$0xf]
  %v110 = vld [vmem:[%s1 + $0x64] sm:$0xf]
  %v111 = vld [vmem:[%s1 + $0x68] sm:$0xf]
  %v112 = vld [vmem:[%s1 + $0x6c] sm:$0xf]
  %v113 = vld [vmem:[%s1 + $0x70] sm:$0xf]
  %v114 = vld [vmem:[%s1 + $0x74] sm:$0xf]
  %v115 = vld [vmem:[%s1 + $0x78] sm:$0xf]
  %v116 = vld [vmem:[%s1 + $0x7c] sm:$0xf]
  %v117 = vld [vmem:[%s1 + $0x80] sm:$0xf]
  %v118 = vld [vmem:[%s1 + $0x84] sm:$0xf]
  %v119 = vld [vmem:[%s1 + $0x88] sm:$0xf]
  %v120 = vld [vmem:[%s1 + $0x8c] sm:$0xf]
  %v121 = vld [vmem:[%s1 + $0x90] sm:$0xf]
  %v122 = vld [vmem:[%s1 + $0x94] sm:$0xf]
  %v123 = vld [vmem:[%s1 + $0x98] sm:$0xf]
  %v124 = vld [vmem:[%s1 + $0x9c] sm:$0xf]
  %v125 = vld [vmem:[%s1 + $0xa0] sm:$0xf]
  %v126 = vld [vmem:[%s1 + $0xa4] sm:$0xf]
  %v127 = vld [vmem:[%s1 + $0xa8] sm:$0xf]
  %v128 = vld [vmem:[%s1 + $0xac] sm:$0xf]
  %v129 = vld [vmem:[%s1 + $0xb0] sm:$0xf]
  %v130 = vld [vmem:[%s1 + $0xb4] sm:$0xf]
  %v131 = vld [vmem:[%s1 + $0xb8] sm:$0xf]
  %v132 = vld [vmem:[%s1 + $0xbc] sm:$0xf]
  %v133 = vld [vmem:[%s1 + $0xc0] sm:$0xf]
  %v134 = vld [vmem:[%s1 + $0xc4] sm:$0xf]
  %v135 = vld [vmem:[%s1 + $0xc8] sm:$0xf]
  %v136 = vld [vmem:[%s1 + $0xcc] sm:$0xf]
  %v137 = vld [vmem:[%s1 + $0xd0] sm:$0xf]
  %v138 = vld [vmem:[%s1 + $0xd4] sm:$0xf]
  %v139 = vld [vmem:[%s1 + $0xd8] sm:$0xf]
  %v140 = vld [vmem:[%s1 + $0xdc] sm:$0xf]
  %v141 = vld [vmem:[%s1 + $0xe0] sm:$0xf]
  %v142 = vld [vmem:[%s1 + $0xe4] sm:$0xf]
  %v143 = vld [vmem:[%s1 + $0xe8] sm:$0xf]
  %v144 = vld [vmem:[%s1 + $0xec] sm:$0xf]
  %v145 = vld [vmem:[%s1 + $0xf0] sm:$0xf]
  %v146 = vld [vmem:[%s1 + $0xf4] sm:$0xf]
  %v147 = vld [vmem:[%s1 + $0xf8] sm:$0xf]
  %v148 = vld [vmem:[%s1 + $0xfc] sm:$0xf]
  %v181 = vunpack.c.l.b16 %v53
  %v182 = vunpack.c.h.b16 %v53
  %v183 = vunpack.c.l.b16 %v54
  %v184 = vunpack.c.h.b16 %v54
  %v185 = vunpack.c.l.b16 %v55
  %v186 = vunpack.c.h.b16 %v55
  %v187 = vunpack.c.l.b16 %v56
  %v188 = vunpack.c.h.b16 %v56
  %v189 = vunpack.c.l.b16 %v57
  %v190 = vunpack.c.h.b16 %v57
  %v191 = vunpack.c.l.b16 %v58
  %v192 = vunpack.c.h.b16 %v58
  %v193 = vunpack.c.l.b16 %v59
  %v194 = vunpack.c.h.b16 %v59
  %v195 = vunpack.c.l.b16 %v60
  %v196 = vunpack.c.h.b16 %v60
  %v197 = vunpack.c.l.b16 %v61
  %v198 = vunpack.c.h.b16 %v61
  %v199 = vunpack.c.l.b16 %v62
  %v200 = vunpack.c.h.b16 %v62
  %v201 = vunpack.c.l.b16 %v63
  %v202 = vunpack.c.h.b16 %v63
  %v203 = vunpack.c.l.b16 %v64
  %v204 = vunpack.c.h.b16 %v64
  %v205 = vunpack.c.l.b16 %v65
  %v206 = vunpack.c.h.b16 %v65
  %v207 = vunpack.c.l.b16 %v66
  %v208 = vunpack.c.h.b16 %v66
  %v209 = vunpack.c.l.b16 %v67
  %v210 = vunpack.c.h.b16 %v67
  %v211 = vunpack.c.l.b16 %v68
  %v212 = vunpack.c.h.b16 %v68
  %v213 = vunpack.c.l.b16 %v69
  %v214 = vunpack.c.h.b16 %v69
  %v215 = vunpack.c.l.b16 %v70
  %v216 = vunpack.c.h.b16 %v70
  %v217 = vunpack.c.l.b16 %v71
  %v218 = vunpack.c.h.b16 %v71
  %v219 = vunpack.c.l.b16 %v72
  %v220 = vunpack.c.h.b16 %v72
  %v221 = vunpack.c.l.b16 %v73
  %v222 = vunpack.c.h.b16 %v73
  %v223 = vunpack.c.l.b16 %v74
  %v224 = vunpack.c.h.b16 %v74
  %v225 = vunpack.c.l.b16 %v75
  %v226 = vunpack.c.h.b16 %v75
  %v227 = vunpack.c.l.b16 %v76
  %v228 = vunpack.c.h.b16 %v76
  %v229 = vunpack.c.l.b16 %v77
  %v230 = vunpack.c.h.b16 %v77
  %v231 = vunpack.c.l.b16 %v78
  %v232 = vunpack.c.h.b16 %v78
  %v233 = vunpack.c.l.b16 %v79
  %v234 = vunpack.c.h.b16 %v79
  %v235 = vunpack.c.l.b16 %v80
  %v236 = vunpack.c.h.b16 %v80
  %v237 = vunpack.c.l.b16 %v81
  %v238 = vunpack.c.h.b16 %v81
  %v239 = vunpack.c.l.b16 %v82
  %v240 = vunpack.c.h.b16 %v82
  %v241 = vunpack.c.l.b16 %v83
  %v242 = vunpack.c.h.b16 %v83
  %v243 = vunpack.c.l.b16 %v84
  %v244 = vunpack.c.h.b16 %v84
  %v245 = vpack.c.b16 %v185, %v181
  %v246 = vpack.c.b16 %v186, %v182
  %v247 = vpack.c.b16 %v187, %v183
  %v248 = vpack.c.b16 %v188, %v184
  %v249 = vpack.c.b16 %v193, %v189
  %v250 = vpack.c.b16 %v194, %v190
  %v251 = vpack.c.b16 %v195, %v191
  %v252 = vpack.c.b16 %v196, %v192
  %v253 = vpack.c.b16 %v201, %v197
  %v254 = vpack.c.b16 %v202, %v198
  %v255 = vpack.c.b16 %v203, %v199
  %v256 = vpack.c.b16 %v204, %v200
  %v257 = vpack.c.b16 %v209, %v205
  %v258 = vpack.c.b16 %v210, %v206
  %v259 = vpack.c.b16 %v211, %v207
  %v260 = vpack.c.b16 %v212, %v208
  %v261 = vpack.c.b16 %v217, %v213
  %v262 = vpack.c.b16 %v218, %v214
  %v263 = vpack.c.b16 %v219, %v215
  %v264 = vpack.c.b16 %v220, %v216
  %v265 = vpack.c.b16 %v225, %v221
  %v266 = vpack.c.b16 %v226, %v222
  %v267 = vpack.c.b16 %v227, %v223
  %v268 = vpack.c.b16 %v228, %v224
  %v269 = vpack.c.b16 %v233, %v229
  %v270 = vpack.c.b16 %v234, %v230
  %v271 = vpack.c.b16 %v235, %v231
  %v272 = vpack.c.b16 %v236, %v232
  %v273 = vpack.c.b16 %v241, %v237
  %v274 = vpack.c.b16 %v242, %v238
  %v275 = vpack.c.b16 %v243, %v239
  %v276 = vpack.c.b16 %v244, %v240
  %v373 = vunpack.c.l.b16 %v85
  %v374 = vunpack.c.l.b16 %v86
  %v375 = vunpack.c.l.b16 %v87
  %v376 = vunpack.c.l.b16 %v88
  %v377 = vunpack.c.l.b16 %v89
  %v378 = vunpack.c.l.b16 %v90
  %v379 = vunpack.c.l.b16 %v91
  %v380 = vunpack.c.l.b16 %v92
  %v381 = vunpack.c.l.b16 %v93
  %v382 = vunpack.c.l.b16 %v94
  %v383 = vunpack.c.l.b16 %v95
  %v384 = vunpack.c.l.b16 %v96
  %v385 = vunpack.c.l.b16 %v97
  %v386 = vunpack.c.l.b16 %v98
  %v387 = vunpack.c.l.b16 %v99
  %v388 = vunpack.c.l.b16 %v100
  %v389 = vunpack.c.l.b16 %v101
  %v390 = vunpack.c.l.b16 %v102
  %v391 = vunpack.c.l.b16 %v103
  %v392 = vunpack.c.l.b16 %v104
  %v393 = vunpack.c.l.b16 %v105
  %v394 = vunpack.c.l.b16 %v106
  %v395 = vunpack.c.l.b16 %v107
  %v396 = vunpack.c.l.b16 %v108
  %v397 = vunpack.c.l.b16 %v109
  %v398 = vunpack.c.l.b16 %v110
  %v399 = vunpack.c.l.b16 %v111
  %v400 = vunpack.c.l.b16 %v112
  %v401 = vunpack.c.l.b16 %v113
  %v402 = vunpack.c.l.b16 %v114
  %v403 = vunpack.c.l.b16 %v115
  %v404 = vunpack.c.l.b16 %v116
  %v405 = vunpack.c.l.b16 %v117
  %v406 = vunpack.c.l.b16 %v118
  %v407 = vunpack.c.l.b16 %v119
  %v408 = vunpack.c.l.b16 %v120
  %v409 = vunpack.c.l.b16 %v121
  %v410 = vunpack.c.l.b16 %v122
  %v411 = vunpack.c.l.b16 %v123
  %v412 = vunpack.c.l.b16 %v124
  %v413 = vunpack.c.l.b16 %v125
  %v414 = vunpack.c.l.b16 %v126
  %v415 = vunpack.c.l.b16 %v127
  %v416 = vunpack.c.l.b16 %v128
  %v417 = vunpack.c.l.b16 %v129
  %v418 = vunpack.c.l.b16 %v130
  %v419 = vunpack.c.l.b16 %v131
  %v420 = vunpack.c.l.b16 %v132
  %v421 = vunpack.c.l.b16 %v133
  %v422 = vunpack.c.l.b16 %v134
  %v423 = vunpack.c.l.b16 %v135
  %v424 = vunpack.c.l.b16 %v136
  %v425 = vunpack.c.l.b16 %v137
  %v426 = vunpack.c.l.b16 %v138
  %v427 = vunpack.c.l.b16 %v139
  %v428 = vunpack.c.l.b16 %v140
  %v429 = vunpack.c.l.b16 %v141
  %v430 = vunpack.c.l.b16 %v142
  %v431 = vunpack.c.l.b16 %v143
  %v432 = vunpack.c.l.b16 %v144
  %v433 = vunpack.c.l.b16 %v145
  %v434 = vunpack.c.l.b16 %v146
  %v435 = vunpack.c.l.b16 %v147
  %v436 = vunpack.c.l.b16 %v148
  %v437 = vpack.c.b16 %v374, %v373
  %v438 = vpack.c.b16 %v376, %v375
  %v439 = vpack.c.b16 %v378, %v377
  %v440 = vpack.c.b16 %v380, %v379
  %v441 = vpack.c.b16 %v382, %v381
  %v442 = vpack.c.b16 %v384, %v383
  %v443 = vpack.c.b16 %v386, %v385
  %v444 = vpack.c.b16 %v388, %v387
  %v445 = vpack.c.b16 %v390, %v389
  %v446 = vpack.c.b16 %v392, %v391
  %v447 = vpack.c.b16 %v394, %v393
  %v448 = vpack.c.b16 %v396, %v395
  %v449 = vpack.c.b16 %v398, %v397
  %v450 = vpack.c.b16 %v400, %v399
  %v451 = vpack.c.b16 %v402, %v401
  %v452 = vpack.c.b16 %v404, %v403
  %v453 = vpack.c.b16 %v406, %v405
  %v454 = vpack.c.b16 %v408, %v407
  %v455 = vpack.c.b16 %v410, %v409
  %v456 = vpack.c.b16 %v412, %v411
  %v457 = vpack.c.b16 %v414, %v413
  %v458 = vpack.c.b16 %v416, %v415
  %v459 = vpack.c.b16 %v418, %v417
  %v460 = vpack.c.b16 %v420, %v419
  %v461 = vpack.c.b16 %v422, %v421
  %v462 = vpack.c.b16 %v424, %v423
  %v463 = vpack.c.b16 %v426, %v425
  %v464 = vpack.c.b16 %v428, %v427
  %v465 = vpack.c.b16 %v430, %v429
  %v466 = vpack.c.b16 %v432, %v431
  %v467 = vpack.c.b16 %v434, %v433
  %v468 = vpack.c.b16 %v436, %v435
  %501 = vmatpush.bf16.msra.mxu0 %v444
  %502 = vmatpush.bf16.msra.mxu0 %v443
  %503 = vmatpush.bf16.msra.mxu0 %v442
  %504 = vmatpush.bf16.msra.mxu0 %v441
  %505 = vmatpush.bf16.msra.mxu0 %v440
  %506 = vmatpush.bf16.msra.mxu0 %v439
  %507 = vmatpush.bf16.msra.mxu0 %v438
  %508 = vmatpush.bf16.msra.mxu0 %v437
  %509 = vmatmul.bf16.gmra.mxu0 %v245
  %v510 = vpop.f32.mrf.mxu0
  %v511 = vadd.f32 0.0, %v510
  %v512 = vpop.f32.mrf.mxu0
  %v513 = vadd.f32 0.0, %v512
  %514 = vmatmul.bf16.gmra.mxu0 %v249
  %v515 = vpop.f32.mrf.mxu0
  %v516 = vadd.f32 0.0, %v515
  %v517 = vpop.f32.mrf.mxu0
  %v518 = vadd.f32 0.0, %v517
  %519 = vmatmul.bf16.gmra.mxu0 %v253
  %v520 = vpop.f32.mrf.mxu0
  %v521 = vadd.f32 0.0, %v520
  %v522 = vpop.f32.mrf.mxu0
  %v523 = vadd.f32 0.0, %v522
  %524 = vmatmul.bf16.gmra.mxu0 %v257
  %v525 = vpop.f32.mrf.mxu0
  %v526 = vadd.f32 0.0, %v525
  %v527 = vpop.f32.mrf.mxu0
  %v528 = vadd.f32 0.0, %v527
  %529 = vmatmul.bf16.gmra.mxu0 %v261
  %v530 = vpop.f32.mrf.mxu0
  %v531 = vadd.f32 0.0, %v530
  %v532 = vpop.f32.mrf.mxu0
  %v533 = vadd.f32 0.0, %v532
  %534 = vmatmul.bf16.gmra.mxu0 %v265
  %v535 = vpop.f32.mrf.mxu0
  %v536 = vadd.f32 0.0, %v535
  %v537 = vpop.f32.mrf.mxu0
  %v538 = vadd.f32 0.0, %v537
  %539 = vmatmul.bf16.gmra.mxu0 %v269
  %v540 = vpop.f32.mrf.mxu0
  %v541 = vadd.f32 0.0, %v540
  %v542 = vpop.f32.mrf.mxu0
  %v543 = vadd.f32 0.0, %v542
  %544 = vmatmul.bf16.gmra.mxu0 %v273
  %v545 = vpop.f32.mrf.mxu0
  %v546 = vadd.f32 0.0, %v545
  %v547 = vpop.f32.mrf.mxu0
  %v548 = vadd.f32 0.0, %v547
  %549 = vdwg.mxu0
  %550 = vmatpush.bf16.msra.mxu0 %v452
  %551 = vmatpush.bf16.msra.mxu0 %v451
  %552 = vmatpush.bf16.msra.mxu0 %v450
  %553 = vmatpush.bf16.msra.mxu0 %v449
  %554 = vmatpush.bf16.msra.mxu0 %v448
  %555 = vmatpush.bf16.msra.mxu0 %v447
  %556 = vmatpush.bf16.msra.mxu0 %v446
  %557 = vmatpush.bf16.msra.mxu0 %v445
  %558 = vmatmul.bf16.gmra.mxu0 %v246
  %v559 = vpop.f32.mrf.mxu0
  %v560 = vadd.f32 %v511, %v559
  %v561 = vpop.f32.mrf.mxu0
  %v562 = vadd.f32 %v513, %v561
  %563 = vmatmul.bf16.gmra.mxu0 %v250
  %v564 = vpop.f32.mrf.mxu0
  %v565 = vadd.f32 %v516, %v564
  %v566 = vpop.f32.mrf.mxu0
  %v567 = vadd.f32 %v518, %v566
  %568 = vmatmul.bf16.gmra.mxu0 %v254
  %v569 = vpop.f32.mrf.mxu0
  %v570 = vadd.f32 %v521, %v569
  %v571 = vpop.f32.mrf.mxu0
  %v572 = vadd.f32 %v523, %v571
  %573 = vmatmul.bf16.gmra.mxu0 %v258
  %v574 = vpop.f32.mrf.mxu0
  %v575 = vadd.f32 %v526, %v574
  %v576 = vpop.f32.mrf.mxu0
  %v577 = vadd.f32 %v528, %v576
  %578 = vmatmul.bf16.gmra.mxu0 %v262
  %v579 = vpop.f32.mrf.mxu0
  %v580 = vadd.f32 %v531, %v579
  %v581 = vpop.f32.mrf.mxu0
  %v582 = vadd.f32 %v533, %v581
  %583 = vmatmul.bf16.gmra.mxu0 %v266
  %v584 = vpop.f32.mrf.mxu0
  %v585 = vadd.f32 %v536, %v584
  %v586 = vpop.f32.mrf.mxu0
  %v587 = vadd.f32 %v538, %v586
  %588 = vmatmul.bf16.gmra.mxu0 %v270
  %v589 = vpop.f32.mrf.mxu0
  %v590 = vadd.f32 %v541, %v589
  %v591 = vpop.f32.mrf.mxu0
  %v592 = vadd.f32 %v543, %v591
  %593 = vmatmul.bf16.gmra.mxu0 %v274
  %v594 = vpop.f32.mrf.mxu0
  %v595 = vadd.f32 %v546, %v594
  %v596 = vpop.f32.mrf.mxu0
  %v597 = vadd.f32 %v548, %v596
  %598 = vdwg.mxu0
  %599 = vmatpush.bf16.msra.mxu0 %v460
  %600 = vmatpush.bf16.msra.mxu0 %v459
  %601 = vmatpush.bf16.msra.mxu0 %v458
  %602 = vmatpush.bf16.msra.mxu0 %v457
  %603 = vmatpush.bf16.msra.mxu0 %v456
  %604 = vmatpush.bf16.msra.mxu0 %v455
  %605 = vmatpush.bf16.msra.mxu0 %v454
  %606 = vmatpush.bf16.msra.mxu0 %v453
  %607 = vmatmul.bf16.gmra.mxu0 %v247
  %v608 = vpop.f32.mrf.mxu0
  %v609 = vadd.f32 %v560, %v608
  %v610 = vpop.f32.mrf.mxu0
  %v611 = vadd.f32 %v562, %v610
  %612 = vmatmul.bf16.gmra.mxu0 %v251
  %v613 = vpop.f32.mrf.mxu0
  %v614 = vadd.f32 %v565, %v613
  %v615 = vpop.f32.mrf.mxu0
  %v616 = vadd.f32 %v567, %v615
  %617 = vmatmul.bf16.gmra.mxu0 %v255
  %v618 = vpop.f32.mrf.mxu0
  %v619 = vadd.f32 %v570, %v618
  %v620 = vpop.f32.mrf.mxu0
  %v621 = vadd.f32 %v572, %v620
  %622 = vmatmul.bf16.gmra.mxu0 %v259
  %v623 = vpop.f32.mrf.mxu0
  %v624 = vadd.f32 %v575, %v623
  %v625 = vpop.f32.mrf.mxu0
  %v626 = vadd.f32 %v577, %v625
  %627 = vmatmul.bf16.gmra.mxu0 %v263
  %v628 = vpop.f32.mrf.mxu0
  %v629 = vadd.f32 %v580, %v628
  %v630 = vpop.f32.mrf.mxu0
  %v631 = vadd.f32 %v582, %v630
  %632 = vmatmul.bf16.gmra.mxu0 %v267
  %v633 = vpop.f32.mrf.mxu0
  %v634 = vadd.f32 %v585, %v633
  %v635 = vpop.f32.mrf.mxu0
  %v636 = vadd.f32 %v587, %v635
  %637 = vmatmul.bf16.gmra.mxu0 %v271
  %v638 = vpop.f32.mrf.mxu0
  %v639 = vadd.f32 %v590, %v638
  %v640 = vpop.f32.mrf.mxu0
  %v641 = vadd.f32 %v592, %v640
  %642 = vmatmul.bf16.gmra.mxu0 %v275
  %v643 = vpop.f32.mrf.mxu0
  %v644 = vadd.f32 %v595, %v643
  %v645 = vpop.f32.mrf.mxu0
  %v646 = vadd.f32 %v597, %v645
  %647 = vdwg.mxu0
  %648 = vmatpush.bf16.msra.mxu0 %v468
  %649 = vmatpush.bf16.msra.mxu0 %v467
  %650 = vmatpush.bf16.msra.mxu0 %v466
  %651 = vmatpush.bf16.msra.mxu0 %v465
  %652 = vmatpush.bf16.msra.mxu0 %v464
  %653 = vmatpush.bf16.msra.mxu0 %v463
  %654 = vmatpush.bf16.msra.mxu0 %v462
  %655 = vmatpush.bf16.msra.mxu0 %v461
  %656 = vmatmul.bf16.gmra.mxu0 %v248
  %v657 = vpop.f32.mrf.mxu0
  %v658 = vadd.f32 %v609, %v657
  %v659 = vpop.f32.mrf.mxu0
  %v660 = vadd.f32 %v611, %v659
  %661 = vmatmul.bf16.gmra.mxu0 %v252
  %v662 = vpop.f32.mrf.mxu0
  %v663 = vadd.f32 %v614, %v662
  %v664 = vpop.f32.mrf.mxu0
  %v665 = vadd.f32 %v616, %v664
  %666 = vmatmul.bf16.gmra.mxu0 %v256
  %v667 = vpop.f32.mrf.mxu0
  %v668 = vadd.f32 %v619, %v667
  %v669 = vpop.f32.mrf.mxu0
  %v670 = vadd.f32 %v621, %v669
  %671 = vmatmul.bf16.gmra.mxu0 %v260
  %v672 = vpop.f32.mrf.mxu0
  %v673 = vadd.f32 %v624, %v672
  %v674 = vpop.f32.mrf.mxu0
  %v675 = vadd.f32 %v626, %v674
  %676 = vmatmul.bf16.gmra.mxu0 %v264
  %v677 = vpop.f32.mrf.mxu0
  %v678 = vadd.f32 %v629, %v677
  %v679 = vpop.f32.mrf.mxu0
  %v680 = vadd.f32 %v631, %v679
  %681 = vmatmul.bf16.gmra.mxu0 %v268
  %v682 = vpop.f32.mrf.mxu0
  %v683 = vadd.f32 %v634, %v682
  %v684 = vpop.f32.mrf.mxu0
  %v685 = vadd.f32 %v636, %v684
  %686 = vmatmul.bf16.gmra.mxu0 %v272
  %v687 = vpop.f32.mrf.mxu0
  %v688 = vadd.f32 %v639, %v687
  %v689 = vpop.f32.mrf.mxu0
  %v690 = vadd.f32 %v641, %v689
  %691 = vmatmul.bf16.gmra.mxu0 %v276
  %v692 = vpop.f32.mrf.mxu0
  %v693 = vadd.f32 %v644, %v692
  %v694 = vpop.f32.mrf.mxu0
  %v695 = vadd.f32 %v646, %v694
  %696 = vdwg.mxu0
  %v697 = vadd.f32 %v37, %v658
  %v698 = vadd.f32 %v38, %v660
  %v699 = vadd.f32 %v39, %v663
  %v700 = vadd.f32 %v40, %v665
  %v701 = vadd.f32 %v41, %v668
  %v702 = vadd.f32 %v42, %v670
  %v703 = vadd.f32 %v43, %v673
  %v704 = vadd.f32 %v44, %v675
  %v705 = vadd.f32 %v45, %v678
  %v706 = vadd.f32 %v46, %v680
  %v707 = vadd.f32 %v47, %v683
  %v708 = vadd.f32 %v48, %v685
  %v709 = vadd.f32 %v49, %v688
  %v710 = vadd.f32 %v50, %v690
  %v711 = vadd.f32 %v51, %v693
  %v712 = vadd.f32 %v52, %v695
  %713 = vst [vmem:[#allocation2] sm:$0xff] %v697
  %714 = vst [vmem:[#allocation2 + $0x8] sm:$0xff] %v698
  %715 = vst [vmem:[#allocation2 + $0x10] sm:$0xff] %v699
  %716 = vst [vmem:[#allocation2 + $0x18] sm:$0xff] %v700
  %717 = vst [vmem:[#allocation2 + $0x20] sm:$0xff] %v701
  %718 = vst [vmem:[#allocation2 + $0x28] sm:$0xff] %v702
  %719 = vst [vmem:[#allocation2 + $0x30] sm:$0xff] %v703
  %720 = vst [vmem:[#allocation2 + $0x38] sm:$0xff] %v704
  %721 = vst [vmem:[#allocation2 + $0x40] sm:$0xff] %v705
  %722 = vst [vmem:[#allocation2 + $0x48] sm:$0xff] %v706
  %723 = vst [vmem:[#allocation2 + $0x50] sm:$0xff] %v707
  %724 = vst [vmem:[#allocation2 + $0x58] sm:$0xff] %v708
  %725 = vst [vmem:[#allocation2 + $0x60] sm:$0xff] %v709
  %726 = vst [vmem:[#allocation2 + $0x68] sm:$0xff] %v710
  %727 = vst [vmem:[#allocation2 + $0x70] sm:$0xff] %v711
  %728 = vst [vmem:[#allocation2 + $0x78] sm:$0xff] %v712
  // Predicated region
  $region22: #{pallas_matmul_fused.1} parent=0 // pred_check
    %p729 = pneg %p17
  $region23: #{pallas_matmul_fused.1} parent=0 // pred_check_branch
    %731 = sbr.rel (%p729) target = $region25
  $region24: #{pallas_matmul_fused.1} parent=0 // pred_region
    %v732 = vld [vmem:[#allocation2] sm:$0xff]
    %v733 = vld [vmem:[#allocation2 + $0x8] sm:$0xff]
    %v734 = vld [vmem:[#allocation2 + $0x10] sm:$0xff]
    %v735 = vld [vmem:[#allocation2 + $0x18] sm:$0xff]
    %v736 = vld [vmem:[#allocation2 + $0x20] sm:$0xff]
    %v737 = vld [vmem:[#allocation2 + $0x28] sm:$0xff]
    %v738 = vld [vmem:[#allocation2 + $0x30] sm:$0xff]
    %v739 = vld [vmem:[#allocation2 + $0x38] sm:$0xff]
    %v740 = vld [vmem:[#allocation2 + $0x40] sm:$0xff]
    %v741 = vld [vmem:[#allocation2 + $0x48] sm:$0xff]
    %v742 = vld [vmem:[#allocation2 + $0x50] sm:$0xff]
    %v743 = vld [vmem:[#allocation2 + $0x58] sm:$0xff]
    %v744 = vld [vmem:[#allocation2 + $0x60] sm:$0xff]
    %v745 = vld [vmem:[#allocation2 + $0x68] sm:$0xff]
    %v746 = vld [vmem:[#allocation2 + $0x70] sm:$0xff]
    %v747 = vld [vmem:[#allocation2 + $0x78] sm:$0xff]
    %v748 = vld [vmem:[%s2] sm:$0x1]
    %v750 = vperm.slane %v748, 0
    %v752 = vmul.f32 %v732, %v750
    %v753 = vmul.f32 %v733, %v750
    %v754 = vmul.f32 %v734, %v750
    %v755 = vmul.f32 %v735, %v750
    %v756 = vmul.f32 %v736, %v750
    %v757 = vmul.f32 %v737, %v750
    %v758 = vmul.f32 %v738, %v750
    %v759 = vmul.f32 %v739, %v750
    %v760 = vmul.f32 %v740, %v750
    %v761 = vmul.f32 %v741, %v750
    %v762 = vmul.f32 %v742, %v750
    %v763 = vmul.f32 %v743, %v750
    %v764 = vmul.f32 %v744, %v750
    %v765 = vmul.f32 %v745, %v750
    %v766 = vmul.f32 %v746, %v750
    %v767 = vmul.f32 %v747, %v750
    %v768 = vld [vmem:[%s3] sm:$0x1]
    %v770 = vperm.slane %v768, 0
    %v772 = vadd.f32 %v752, %v770
    %v773 = vadd.f32 %v753, %v770
    %v774 = vadd.f32 %v754, %v770
    %v775 = vadd.f32 %v755, %v770
    %v776 = vadd.f32 %v756, %v770
    %v777 = vadd.f32 %v757, %v770
    %v778 = vadd.f32 %v758, %v770
    %v779 = vadd.f32 %v759, %v770
    %v780 = vadd.f32 %v760, %v770
    %v781 = vadd.f32 %v761, %v770
    %v782 = vadd.f32 %v762, %v770
    %v783 = vadd.f32 %v763, %v770
    %v784 = vadd.f32 %v764, %v770
    %v785 = vadd.f32 %v765, %v770
    %v786 = vadd.f32 %v766, %v770
    %v787 = vadd.f32 %v767, %v770
    %v788 = vmax.f32 %v772, 0.0
    %v789 = vmax.f32 %v773, 0.0
    %v790 = vmax.f32 %v774, 0.0
    %v791 = vmax.f32 %v775, 0.0
    %v792 = vmax.f32 %v776, 0.0
    %v793 = vmax.f32 %v777, 0.0
    %v794 = vmax.f32 %v778, 0.0
    %v795 = vmax.f32 %v779, 0.0
    %v796 = vmax.f32 %v780, 0.0
    %v797 = vmax.f32 %v781, 0.0
    %v798 = vmax.f32 %v782, 0.0
    %v799 = vmax.f32 %v783, 0.0
    %v800 = vmax.f32 %v784, 0.0
    %v801 = vmax.f32 %v785, 0.0
    %v802 = vmax.f32 %v786, 0.0
    %v803 = vmax.f32 %v787, 0.0
    %v804 = vpack.c.bf16 %v788, %v788
    %v805 = vpack.c.bf16 %v789, %v789
    %v806 = vpack.c.bf16 %v790, %v790
    %v807 = vpack.c.bf16 %v791, %v791
    %v808 = vpack.c.bf16 %v792, %v792
    %v809 = vpack.c.bf16 %v793, %v793
    %v810 = vpack.c.bf16 %v794, %v794
    %v811 = vpack.c.bf16 %v795, %v795
    %v812 = vpack.c.bf16 %v796, %v796
    %v813 = vpack.c.bf16 %v797, %v797
    %v814 = vpack.c.bf16 %v798, %v798
    %v815 = vpack.c.bf16 %v799, %v799
    %v816 = vpack.c.bf16 %v800, %v800
    %v817 = vpack.c.bf16 %v801, %v801
    %v818 = vpack.c.bf16 %v802, %v802
    %v819 = vpack.c.bf16 %v803, %v803
    %820 = vst [vmem:[%s4] sm:$0xf] %v804
    %821 = vst [vmem:[%s4 + $0x4] sm:$0xf] %v805
    %822 = vst [vmem:[%s4 + $0x8] sm:$0xf] %v806
    %823 = vst [vmem:[%s4 + $0xc] sm:$0xf] %v807
    %824 = vst [vmem:[%s4 + $0x10] sm:$0xf] %v808
    %825 = vst [vmem:[%s4 + $0x14] sm:$0xf] %v809
    %826 = vst [vmem:[%s4 + $0x18] sm:$0xf] %v810
    %827 = vst [vmem:[%s4 + $0x1c] sm:$0xf] %v811
    %828 = vst [vmem:[%s4 + $0x20] sm:$0xf] %v812
    %829 = vst [vmem:[%s4 + $0x24] sm:$0xf] %v813
    %830 = vst [vmem:[%s4 + $0x28] sm:$0xf] %v814
    %831 = vst [vmem:[%s4 + $0x2c] sm:$0xf] %v815
    %832 = vst [vmem:[%s4 + $0x30] sm:$0xf] %v816
    %833 = vst [vmem:[%s4 + $0x34] sm:$0xf] %v817
    %834 = vst [vmem:[%s4 + $0x38] sm:$0xf] %v818
    %835 = vst [vmem:[%s4 + $0x3c] sm:$0xf] %v819
  $region25: #{pallas_matmul_fused.1} parent=0 // pred_fallthru
    _
  // Predicated region
  $region26: #{pallas_matmul_fused.1} parent=0 // pred_check
    _
  $region27: #{pallas_matmul_fused.1} parent=0 // pred_check_branch
    %837 = sbr.rel (0) target = $region29
  $region28: #{pallas_matmul_fused.1} parent=0 // pred_region
    _
  $region29: #{pallas_matmul_fused.1} parent=0 // pred_fallthru
    _
  // Predicated region
  $region30: #{pallas_matmul_fused.1} parent=0 // pred_check
    _
  $region31: #{pallas_matmul_fused.1} parent=0 // pred_check_branch
    %839 = sbr.rel (0) target = $region33
  $region32: #{pallas_matmul_fused.1} parent=0 // pred_region
    _
  $region33: #{pallas_matmul_fused.1} parent=0 // pred_fallthru
    _

</llo_original>
